<compile_context>
chip_gen: v7x
topology: tpu7x:2x2x1
jax: 0.10.0
libtpu: 0.0.40
codegen_flags: <defaults>
</compile_context>

<pallas_src>
import math

import jax
import jax.numpy as jnp
from jax import lax
from jax.experimental import pallas as pl
from jax.experimental.pallas import tpu as pltpu

_INV_SQRT2 = 0.7071067811865476


def _gelu_exact(x):
    # Exact erf-based GELU, matching torch.nn.functional.gelu default.
    return 0.5 * x * (1.0 + lax.erf(x * _INV_SQRT2))


def _target_aware_attention_kernel(q_ref, k_ref, v_ref, w_ref, o_ref):
    # q_ref: (Bt, C, E)   k_ref: (Bt, N, E)   v_ref: (Bt, N, C)
    # w_ref: (E, E)       o_ref: (Bt, N)
    Bt, C, E = q_ref.shape

    q = q_ref[...]
    k = k_ref[...]
    v = v_ref[...]
    w = w_ref[...]

    # ---- proj = gelu(query @ W^T).  nn.Linear(bias=False) contracts the last
    # dim of BOTH operands, so no transpose is needed anywhere.
    # Sublane packing: 8 rows/vreg for 32-bit, 16 for 16-bit dtypes -- the
    # (Bt, C, E) -> (Bt*C, E) merge is only relayout-free when C is a multiple
    # of that packing factor.
    sublane_pack = 8 * max(1, 4 // q.dtype.itemsize)
    if C % sublane_pack == 0:
        # Flatten all Bt*C rows into ONE MXU matmul (layout-free merge).
        q2 = q.reshape(Bt * C, E)
        proj = lax.dot_general(
            q2, w,
            dimension_numbers=(((1,), (1,)), ((), ())),
            preferred_element_type=jnp.float32)          # (Bt*C, E), f32 accum
        proj = _gelu_exact(proj)                          # f32 VPU/EUP math
        if proj.dtype != k.dtype:
            proj = proj.astype(k.dtype)                   # bf16 MXU feed if bf16 in
        proj = proj.reshape(Bt, C, E)
    else:
        # Fallback when C is not sublane-aligned for this dtype: let einsum do
        # the internal flatten (still last-dim contraction, still one matmul
        # per step).
        proj = jnp.einsum("bce,fe->bcf", q, w,
                          preferred_element_type=jnp.float32)
        proj = _gelu_exact(proj)
        if proj.dtype != k.dtype:
            proj = proj.astype(k.dtype)

    # ---- scores[b] = key[b] @ proj[b]^T : batched matmul contracting the
    # lane-resident E axis (no transpose), f32 accumulation.
    scores = jnp.einsum("bne,bce->bnc", k, proj,
                        preferred_element_type=jnp.float32)   # (Bt, N, C)

    # ---- softmax over the context-code axis fused with the weighted sum:
    #   out = sum_c(exp(s - m) * v) / sum_c(exp(s - m))
    # Exact divide, done once per (b, n) instead of per (b, n, c); no
    # materialized `weights` temporary.
    m = jnp.max(scores, axis=-1, keepdims=True)
    e = jnp.exp(scores - m)                                   # (Bt, N, C) f32
    denom = jnp.sum(e, axis=-1)                               # (Bt, N)
    num = jnp.sum(e * v, axis=-1)                             # (Bt, N), v promoted to f32
    out = num / denom

    o_ref[...] = out.astype(o_ref.dtype)


def _vmem_numbers():
    """Generation-aware (double-buffer budget, scoped VMEM limit) in bytes."""
    try:
        cap = pltpu.get_tpu_info().vmem_capacity_bytes
    except Exception:
        cap = 64 * 1024 * 1024  # conservative default (v7x per-TC)
    if cap >= 96 * 1024 * 1024:
        # v5e / v6e: 128 MiB physical VMEM.
        return 48 * 1024 * 1024, 80 * 1024 * 1024
    # v7x: 64 MiB physical VMEM per TensorCore.
    return 24 * 1024 * 1024, 44 * 1024 * 1024


def _choose_block_batch(B, C, N, E, itemsizes, vmem_budget):
    """Pick the batch tile Bt.

    Objective (per performance review): HBM/DMA saturation -- the LARGEST Bt
    whose double-buffered footprint fits the generation-aware VMEM budget, so
    each grid step moves as many bytes as possible and the ~0.35 us per-step
    overhead is amortized.  Constraints: Bt divides B, and Bt == B or
    Bt % 8 == 0 (so the (Bt, N) output block satisfies the sublane rule).
    Mildly prefer an even number of grid steps (v7x megacore).
    """
    q_it, k_it, v_it, o_it, w_it = itemsizes
    per_batch = C * E * q_it + N * E * k_it + N * C * v_it + N * o_it
    fixed = 2 * E * E * w_it

    def fits(bt):
        return 2 * bt * per_batch + fixed <= vmem_budget

    cands = [bt for bt in range(1, B + 1)
             if B % bt == 0 and (bt == B or bt % 8 == 0) and fits(bt)]
    if not cands:
        raise ValueError(
            f"TargetAwareAttention: no batch tile fits VMEM budget "
            f"{vmem_budget} bytes (per-batch footprint {per_batch} bytes); "
            f"shapes B={B}, C={C}, N={N}, E={E}.")

    best = max(cands)
    steps = B // best
    if steps > 1 and steps % 2 == 1:
        # Prefer an even grid length for v7x's two TensorCores, but only if it
        # does not shrink the step below half the largest fitting block.
        even = [bt for bt in cands if (B // bt) % 2 == 0]
        if even and 2 * max(even) >= best:
            best = max(even)
    return best


def target_aware_attention(query, key, value, weight, *, block_batch=None):
    """query (B,C,E), key (B,N,E), value (B,N,C), weight (E,E) -> (B,N)."""
    B, C, E = query.shape
    _, N, _ = key.shape
    assert key.shape == (B, N, E)
    assert value.shape == (B, N, C)
    assert weight.shape == (E, E)

    vmem_budget, vmem_limit = _vmem_numbers()
    itemsizes = (query.dtype.itemsize, key.dtype.itemsize, value.dtype.itemsize,
                 query.dtype.itemsize, weight.dtype.itemsize)
    Bt = block_batch or _choose_block_batch(B, C, N, E, itemsizes, vmem_budget)
    assert B % Bt == 0 and (Bt == B or Bt % 8 == 0)

    return pl.pallas_call(
        _target_aware_attention_kernel,
        out_shape=jax.ShapeDtypeStruct((B, N), query.dtype),
        grid_spec=pltpu.PrefetchScalarGridSpec(
            num_scalar_prefetch=0,
            grid=(B // Bt,),
            in_specs=[
                pl.BlockSpec((Bt, C, E), lambda b: (b, 0, 0)),   # query
                pl.BlockSpec((Bt, N, E), lambda b: (b, 0, 0)),   # key
                pl.BlockSpec((Bt, N, C), lambda b: (b, 0, 0)),   # value
                pl.BlockSpec((E, E),     lambda b: (0, 0)),      # linear weight
            ],
            out_specs=pl.BlockSpec((Bt, N), lambda b: (b, 0)),
        ),
        compiler_params=pltpu.CompilerParams(
            dimension_semantics=("parallel",),
            vmem_limit_bytes=vmem_limit),
    )(query, key, value, weight)


def _reference(query, key, value, weight):
    proj = jax.nn.gelu(jnp.einsum("bce,fe->bcf", query, weight),
                       approximate=False)
    scores = jnp.einsum("bne,bce->bnc", key, proj)
    w = jax.nn.softmax(scores, axis=-1)
    return jnp.sum(w * value, axis=-1)


if __name__ == "__main__":
    # Small shapes consistent with the module's forward signature.
    B = 4          # batch_size
    C = 8          # num_context_codes
    N = 8          # num_candidates
    E = 32         # embed_dim

    key0 = jax.random.PRNGKey(0)
    kq, kk, kv, kw = jax.random.split(key0, 4)

    query = jax.random.normal(kq, (B, C, E), dtype=jnp.float32)
    key_t = jax.random.normal(kk, (B, N, E), dtype=jnp.float32)
    value = jax.random.normal(kv, (B, N, C), dtype=jnp.float32)
    # nn.Linear(embed_dim, embed_dim, bias=False) weight
    weight = jax.random.normal(kw, (E, E), dtype=jnp.float32) * (1.0 / math.sqrt(E))

    out = target_aware_attention(query, key_t, value, weight)
    jax.block_until_ready(out)

    ref = _reference(query, key_t, value, weight)
    assert out.shape == (B, N)
    assert jnp.allclose(out, ref, atol=1e-4, rtol=1e-4), (
        f"max diff {jnp.max(jnp.abs(out - ref))}")

    print("KERNEL_OK")
</pallas_src>

<mosaic_0001>
module attributes {stable_mosaic.version = 11 : i64} {
  func.func @_target_aware_attention_kernel(%arg0: i32, %arg1: memref<4x8x32xf32, #tpu.memory_space<vmem>>, %arg2: memref<4x8x32xf32, #tpu.memory_space<vmem>>, %arg3: memref<4x8x8xf32, #tpu.memory_space<vmem>>, %arg4: memref<32x32xf32, #tpu.memory_space<vmem>>, %arg5: memref<4x8xf32, #tpu.memory_space<vmem>>) attributes {dimension_semantics = [#tpu.dimension_semantics<parallel>], iteration_bounds = array<i64: 1>, scalar_prefetch = 0 : i64, scratch_operands = 0 : i64, tpu.core_type = #tpu.core_type<tc>, window_params = [{transform_indices = @transform_0, window_bounds = array<i64: 4, 8, 32>}, {transform_indices = @transform_1, window_bounds = array<i64: 4, 8, 32>}, {transform_indices = @transform_2, window_bounds = array<i64: 4, 8, 8>}, {pipeline_mode = #tpu.pipeline_mode<synchronous>, transform_indices = @transform_3, window_bounds = array<i64: 32, 32>}, {transform_indices = @transform_4, window_bounds = array<i64: 4, 8>}]} {
    %c0 = arith.constant 0 : index
    %c0_0 = arith.constant 0 : index
    %c0_1 = arith.constant 0 : index
    %0 = vector.load %arg1[%c0, %c0_0, %c0_1] : memref<4x8x32xf32, #tpu.memory_space<vmem>>, vector<4x8x32xf32>
    %c0_2 = arith.constant 0 : index
    %c0_3 = arith.constant 0 : index
    %c0_4 = arith.constant 0 : index
    %1 = vector.load %arg2[%c0_2, %c0_3, %c0_4] : memref<4x8x32xf32, #tpu.memory_space<vmem>>, vector<4x8x32xf32>
    %c0_5 = arith.constant 0 : index
    %c0_6 = arith.constant 0 : index
    %c0_7 = arith.constant 0 : index
    %2 = vector.load %arg3[%c0_5, %c0_6, %c0_7] : memref<4x8x8xf32, #tpu.memory_space<vmem>>, vector<4x8x8xf32>
    %c0_8 = arith.constant 0 : index
    %c0_9 = arith.constant 0 : index
    %3 = vector.load %arg4[%c0_8, %c0_9] : memref<32x32xf32, #tpu.memory_space<vmem>>, vector<32x32xf32>
    %4 = vector.shape_cast %0 : vector<4x8x32xf32> to vector<32x32xf32>
    %cst = arith.constant dense<0.000000e+00> : vector<32x32xf32>
    %5 = tpu.matmul %4, %3, %cst {dimension_numbers = #tpu.dot_dimension_numbers<[1], [1], [0], [0], [0, 0, 1, 0], [], []>} : vector<32x32xf32>, vector<32x32xf32>, vector<32x32xf32> -> vector<32x32xf32>
    %cst_10 = arith.constant 5.000000e-01 : f32
    %6 = vector.broadcast %cst_10 : f32 to vector<32x32xf32>
    %7 = arith.mulf %6, %5 : vector<32x32xf32>
    %cst_11 = arith.constant 0.707106769 : f32
    %8 = vector.broadcast %cst_11 : f32 to vector<32x32xf32>
    %9 = arith.mulf %5, %8 : vector<32x32xf32>
    %10 = math.erf %9 : vector<32x32xf32>
    %cst_12 = arith.constant 1.000000e+00 : f32
    %11 = vector.broadcast %cst_12 : f32 to vector<32x32xf32>
    %12 = arith.addf %11, %10 : vector<32x32xf32>
    %13 = arith.mulf %7, %12 : vector<32x32xf32>
    %14 = vector.shape_cast %13 : vector<32x32xf32> to vector<4x8x32xf32>
    "tpu.trace_start"() <{level = 10 : i32, message = "bne,bce->bnc"}> : () -> ()
    %cst_13 = arith.constant dense<0.000000e+00> : vector<4x8x8xf32>
    %15 = tpu.matmul %1, %14, %cst_13 {dimension_numbers = #tpu.dot_dimension_numbers<[2], [2], [1], [1], [0, 0, 0, 1, 1, 1], [0], [0]>} : vector<4x8x32xf32>, vector<4x8x32xf32>, vector<4x8x8xf32> -> vector<4x8x8xf32>
    "tpu.trace_stop"() : () -> ()
    %cst_14 = arith.constant dense<0xFF800000> : vector<4x8xf32>
    %16 = vector.multi_reduction <maximumf>, %15, %cst_14 [2] : vector<4x8x8xf32> to vector<4x8xf32>
    %17 = vector.shape_cast %16 : vector<4x8xf32> to vector<4x8x1xf32>
    %18 = vector.broadcast %17 : vector<4x8x1xf32> to vector<4x8x8xf32>
    %19 = arith.subf %15, %18 : vector<4x8x8xf32>
    %20 = math.exp %19 : vector<4x8x8xf32>
    %cst_15 = arith.constant dense<0.000000e+00> : vector<4x8xf32>
    %21 = vector.multi_reduction <add>, %20, %cst_15 [2] : vector<4x8x8xf32> to vector<4x8xf32>
    %22 = arith.mulf %20, %2 : vector<4x8x8xf32>
    %cst_16 = arith.constant dense<0.000000e+00> : vector<4x8xf32>
    %23 = vector.multi_reduction <add>, %22, %cst_16 [2] : vector<4x8x8xf32> to vector<4x8xf32>
    %24 = arith.divf %23, %21 : vector<4x8xf32>
    %c0_17 = arith.constant 0 : index
    %c0_18 = arith.constant 0 : index
    %25 = vector.load %arg5[%c0_17, %c0_18] : memref<4x8xf32, #tpu.memory_space<vmem>>, vector<4x8xf32>
    tpu.vector_store %arg5[%c0_17, %c0_18], %24 {strides = array<i32>} : memref<4x8xf32, #tpu.memory_space<vmem>>, vector<4x8xf32>,
    return
  }
  func.func @transform_0(%arg0: i32) -> (i32, i32, i32) {
    %c0_i32 = arith.constant 0 : i32
    %c0_i32_0 = arith.constant 0 : i32
    %c0_i32_1 = arith.constant 0 : i32
    return %arg0, %c0_i32, %c0_i32_0 : i32, i32, i32
  }
  func.func @transform_1(%arg0: i32) -> (i32, i32, i32) {
    %c0_i32 = arith.constant 0 : i32
    %c0_i32_0 = arith.constant 0 : i32
    %c0_i32_1 = arith.constant 0 : i32
    return %arg0, %c0_i32, %c0_i32_0 : i32, i32, i32
  }
  func.func @transform_2(%arg0: i32) -> (i32, i32, i32) {
    %c0_i32 = arith.constant 0 : i32
    %c0_i32_0 = arith.constant 0 : i32
    %c0_i32_1 = arith.constant 0 : i32
    return %arg0, %c0_i32, %c0_i32_0 : i32, i32, i32
  }
  func.func @transform_3(%arg0: i32) -> (i32, i32) {
    %c0_i32 = arith.constant 0 : i32
    %c0_i32_0 = arith.constant 0 : i32
    %c0_i32_1 = arith.constant 0 : i32
    return %c0_i32, %c0_i32_0 : i32, i32
  }
  func.func @transform_4(%arg0: i32) -> (i32, i32) {
    %c0_i32 = arith.constant 0 : i32
    %c0_i32_0 = arith.constant 0 : i32
    return %arg0, %c0_i32 : i32, i32
  }
}

</mosaic_0001>

<llo_original>
// kernel: tpu_custom_call.1
$region0: #{tpu_custom_call.1}
  #allocation0 [shape = 'u32[]', space=smem, size = 0x4, offset = 0x4, fixed_abs, tag = 'smem constant byte address 0x4 - core index']
  #allocation1 [shape = 'u32[144,128]{1,0:T(1,128)}', space=vmem, size = 0x12000, scoped, tag = 'internal scratch']
  %s0 = inlined_call_operand.hbm [shape: f32[4,8,32], index: 0, kind: input, shape index: {}]
  %s1 = inlined_call_operand.hbm [shape: f32[4,8,32], index: 1, kind: input, shape index: {}]
  %s2 = inlined_call_operand.hbm [shape: f32[4,8,8], index: 2, kind: input, shape index: {}]
  %s3 = inlined_call_operand.hbm [shape: f32[32,32], index: 3, kind: input, shape index: {}]
  %s4 = inlined_call_operand.hbm [shape: f32[4,8], index: 4, kind: output, shape index: {}]
  %s5 = sld [smem:[#allocation0]]
  $region42: #{tpu_custom_call.1} parent=0
    _
  %s7 = ssub.s32 1, %s5
  %s8 = scalar_select 0, %s7, %s5
  $region1: #{tpu_custom_call.1} parent=0
    #allocation2 [shape = 'u8[16384]{0}', space=vmem, size = 0x4000, scoped, tag = 'input window, operand 0, single buffered']
    #allocation3 [shape = 's32[1]{0}', space=sflag, size = 0x4, scoped, tag = 'scoped memory for tpu_custom_call.1']
    #allocation4 [shape = 's32[1]{0}', space=sflag, size = 0x4, scoped, tag = 'scoped memory for tpu_custom_call.1']
    #allocation5 [shape = 'u8[16384]{0}', space=vmem, size = 0x4000, scoped, tag = 'input window, operand 1, single buffered']
    #allocation6 [shape = 's32[1]{0}', space=sflag, size = 0x4, scoped, tag = 'scoped memory for tpu_custom_call.1']
    #allocation7 [shape = 'u8[16384]{0}', space=vmem, size = 0x4000, scoped, tag = 'input window, operand 2, single buffered']
    #allocation8 [shape = 'u8[16384]{0}', space=vmem, size = 0x4000, scoped, tag = 'input window, operand 3, single buffered']
    #allocation9 [shape = 's32[1]{0}', space=sflag, size = 0x4, scoped, tag = 'scoped memory for tpu_custom_call.1']
    #allocation10 [shape = 'u8[2048]{0}', space=vmem, size = 0x800, scoped, tag = 'output window, operand 0, single buffered']
    %9 = vsyncpa [#allocation3], 0
    %10 = vsyncpa [#allocation6], 0
    %11 = vsyncpa [#allocation9], 0
    %12 = vsyncpa [#allocation4], 0
    // Predicated region
    $region2: #{tpu_custom_call.1} parent=1 // pred_check
      _
    $region3: #{tpu_custom_call.1} parent=1 // pred_check_branch
      %14 = sbr.rel (0) target = $region5
    $region4: #{tpu_custom_call.1} parent=1 // pred_region
      %s16 = ssub.s32 512, 512
      %17 = vsyncadd [#allocation3], %s16
      %s18 = sshll.u32 [#allocation2], 4
      %s19 = int_to_ptr.vmem [resolvable:$true] %s18
      %24 = dma.hbm_to_vmem [thread:$0]  %s0, 512, %s19, [#allocation3], 128, 128, 8
    $region5: #{tpu_custom_call.1} parent=1 // pred_fallthru
      _
    // Predicated region
    $region6: #{tpu_custom_call.1} parent=1 // pred_check
      _
    $region7: #{tpu_custom_call.1} parent=1 // pred_check_branch
      %26 = sbr.rel (0) target = $region9
    $region8: #{tpu_custom_call.1} parent=1 // pred_region
      %s28 = ssub.s32 512, 512
      %29 = vsyncadd [#allocation6], %s28
      %s30 = sshll.u32 [#allocation5], 4
      %s31 = int_to_ptr.vmem [resolvable:$true] %s30
      %36 = dma.hbm_to_vmem [thread:$0]  %s1, 512, %s31, [#allocation6], 128, 128, 8
    $region9: #{tpu_custom_call.1} parent=1 // pred_fallthru
      _
    // Predicated region
    $region10: #{tpu_custom_call.1} parent=1 // pred_check
      _
    $region11: #{tpu_custom_call.1} parent=1 // pred_check_branch
      %38 = sbr.rel (0) target = $region13
    $region12: #{tpu_custom_call.1} parent=1 // pred_region
      %s40 = ssub.s32 512, 512
      %41 = vsyncadd [#allocation6], %s40
      %s42 = sshll.u32 [#allocation7], 4
      %s43 = int_to_ptr.vmem [resolvable:$true] %s42
      %48 = dma.hbm_to_vmem [thread:$0]  %s2, 512, %s43, [#allocation6], 128, 128, 8
    $region13: #{tpu_custom_call.1} parent=1 // pred_fallthru
      _
    // Predicated region
    $region14: #{tpu_custom_call.1} parent=1 // pred_check
      _
    $region15: #{tpu_custom_call.1} parent=1 // pred_check_branch
      %50 = sbr.rel (0) target = $region17
    $region16: #{tpu_custom_call.1} parent=1 // pred_region
      %s52 = ssub.s32 512, 512
      %53 = vsyncadd [#allocation9], %s52
      %s54 = sshll.u32 [#allocation8], 4
      %s55 = int_to_ptr.vmem [resolvable:$true] %s54
      %60 = dma.hbm_to_vmem [thread:$0]  %s3, 512, %s55, [#allocation9], 128, 128, 8
    $region17: #{tpu_custom_call.1} parent=1 // pred_fallthru
      _
    // Predicated region
    $region18: #{tpu_custom_call.1} parent=1 // pred_check
      _
    $region19: #{tpu_custom_call.1} parent=1 // pred_check_branch
      %62 = sbr.rel (0) target = $region21
    $region20: #{tpu_custom_call.1} parent=1 // pred_region
      %63 = dma.done [#allocation3], 512
    $region21: #{tpu_custom_call.1} parent=1 // pred_fallthru
      _
    // Predicated region
    $region22: #{tpu_custom_call.1} parent=1 // pred_check
      _
    $region23: #{tpu_custom_call.1} parent=1 // pred_check_branch
      %65 = sbr.rel (0) target = $region25
    $region24: #{tpu_custom_call.1} parent=1 // pred_region
      %66 = dma.done [#allocation6], 512
    $region25: #{tpu_custom_call.1} parent=1 // pred_fallthru
      _
    // Predicated region
    $region26: #{tpu_custom_call.1} parent=1 // pred_check
      _
    $region27: #{tpu_custom_call.1} parent=1 // pred_check_branch
      %68 = sbr.rel (0) target = $region29
    $region28: #{tpu_custom_call.1} parent=1 // pred_region
      %69 = dma.done [#allocation6], 512
    $region29: #{tpu_custom_call.1} parent=1 // pred_fallthru
      _
    // Predicated region
    $region30: #{tpu_custom_call.1} parent=1 // pred_check
      _
    $region31: #{tpu_custom_call.1} parent=1 // pred_check_branch
      %71 = sbr.rel (0) target = $region33
    $region32: #{tpu_custom_call.1} parent=1 // pred_region
      %72 = dma.done [#allocation9], 512
    $region33: #{tpu_custom_call.1} parent=1 // pred_fallthru
      _
    %v73 = vld [vmem:[#allocation2] sm:$0xff]
    %v74 = vld [vmem:[#allocation2 + $0x8] sm:$0xff]
    %v75 = vld [vmem:[#allocation2 + $0x10] sm:$0xff]
    %v76 = vld [vmem:[#allocation2 + $0x18] sm:$0xff]
    %v77 = vld [vmem:[#allocation5] sm:$0xff]
    %v78 = vld [vmem:[#allocation5 + $0x8] sm:$0xff]
    %v79 = vld [vmem:[#allocation5 + $0x10] sm:$0xff]
    %v80 = vld [vmem:[#allocation5 + $0x18] sm:$0xff]
    %v81 = vld [vmem:[#allocation7] sm:$0xff]
    %v82 = vld [vmem:[#allocation7 + $0x8] sm:$0xff]
    %v83 = vld [vmem:[#allocation7 + $0x10] sm:$0xff]
    %v84 = vld [vmem:[#allocation7 + $0x18] sm:$0xff]
    %v85 = vld [vmem:[#allocation8] sm:$0xff]
    %v86 = vld [vmem:[#allocation8 + $0x8] sm:$0xff]
    %v87 = vld [vmem:[#allocation8 + $0x10] sm:$0xff]
    %v88 = vld [vmem:[#allocation8 + $0x18] sm:$0xff]
    %vm89 = vcmask 261120
    %v91 = vsel %vm89, %v73, 0
    %v94 = vsel %vm89, %v74, 0
    %v97 = vsel %vm89, %v75, 0
    %v100 = vsel %vm89, %v76, 0
    %v103 = vsel %vm89, %v85, 0
    %v106 = vsel %vm89, %v86, 0
    %v109 = vsel %vm89, %v87, 0
    %v112 = vsel %vm89, %v88, 0
    %114 = vmatprep.subr.mxu0 0.0
    %115 = vmatpush1.xpose.msra.mxu0 %v103
    %116 = vmatprep.subr.mxu0 0.0
    %117 = vmatpush1.xpose.msra.mxu0 %v106
    %118 = vmatprep.subr.mxu0 0.0
    %119 = vmatpush1.xpose.msra.mxu0 %v109
    %120 = vmatprep.subr.mxu0 0.0
    %121 = vmatpush1.xpose.msra.mxu0 %v112
    %122 = vmatprep.subr.mxu0 0.0
    %123 = vmatpush1.xpose.msra.mxu0 0.0
    %124 = vmatprep.subr.mxu0 0.0
    %125 = vmatpush1.xpose.msra.mxu0 0.0
    %126 = vmatprep.subr.mxu0 0.0
    %127 = vmatpush1.xpose.msra.mxu0 0.0
    %128 = vmatprep.subr.mxu0 0.0
    %129 = vmatpush1.xpose.msra.mxu0 0.0
    %130 = vmatprep.subr.mxu0 0.0
    %131 = vmatpush1.xpose.msra.mxu0 0.0
    %132 = vmatprep.subr.mxu0 0.0
    %133 = vmatpush1.xpose.msra.mxu0 0.0
    %134 = vmatprep.subr.mxu0 0.0
    %135 = vmatpush1.xpose.msra.mxu0 0.0
    %136 = vmatprep.subr.mxu0 0.0
    %137 = vmatpush1.xpose.msra.mxu0 0.0
    %138 = vmatprep.subr.mxu0 0.0
    %139 = vmatpush1.xpose.msra.mxu0 0.0
    %140 = vmatprep.subr.mxu0 0.0
    %141 = vmatpush1.xpose.msra.mxu0 0.0
    %142 = vmatprep.subr.mxu0 0.0
    %143 = vmatpush1.xpose.msra.mxu0 0.0
    %144 = vmatprep.subr.mxu0 0.0
    %145 = vmatpush1.xpose.msra.mxu0 0.0
    %146 = vmatprep.subr.mxu0 0.0
    %147 = vmatpush1.xpose.msra.mxu0 0.0
    %148 = vmatprep.subr.mxu0 0.0
    %149 = vmatpush1.xpose.msra.mxu0 0.0
    %150 = vmatprep.subr.mxu0 0.0
    %151 = vmatpush1.xpose.msra.mxu0 0.0
    %152 = vmatprep.subr.mxu0 0.0
    %153 = vmatpush1.xpose.msra.mxu0 0.0
    %154 = vmatprep.subr.mxu0 0.0
    %155 = vmatpush1.xpose.msra.mxu0 0.0
    %156 = vmatprep.subr.mxu0 0.0
    %157 = vmatpush1.xpose.msra.mxu0 0.0
    %158 = vmatprep.subr.mxu0 0.0
    %159 = vmatpush1.xpose.msra.mxu0 0.0
    %160 = vmatprep.subr.mxu0 0.0
    %161 = vmatpush1.xpose.msra.mxu0 0.0
    %162 = vmatprep.subr.mxu0 0.0
    %163 = vmatpush1.xpose.msra.mxu0 0.0
    %164 = vmatprep.subr.mxu0 0.0
    %165 = vmatpush1.xpose.msra.mxu0 0.0
    %166 = vmatprep.subr.mxu0 0.0
    %167 = vmatpush1.xpose.msra.mxu0 0.0
    %168 = vmatprep.subr.mxu0 0.0
    %169 = vmatpush1.xpose.msra.mxu0 0.0
    %170 = vmatprep.subr.mxu0 0.0
    %171 = vmatpush1.xpose.msra.mxu0 0.0
    %172 = vmatprep.subr.mxu0 0.0
    %173 = vmatpush1.xpose.msra.mxu0 0.0
    %174 = vmatprep.subr.mxu0 0.0
    %175 = vmatpush1.xpose.msra.mxu0 0.0
    %176 = vmatprep.subr.mxu0 0.0
    %177 = vmatpush1.xpose.msra.mxu0 0.0
    %178 = vmatprep.mubr.f32.mxu0 0.0
    %179 = vmatmul.mubr.f32.gmra.mrb[0].mxu0 %v91
    %v180 = vpop.f32.mrb[0].mxu0
    %v181 = vadd.f32 0.0, %v180
    %v182 = vpop.f32.mrb[0].mxu0
    %183 = vmatprep.mubr.f32.mxu0 0.0
    %184 = vmatmul.mubr.f32.gmra.mrb[0].mxu0 %v94
    %v185 = vpop.f32.mrb[0].mxu0
    %v186 = vadd.f32 0.0, %v185
    %v187 = vpop.f32.mrb[0].mxu0
    %188 = vmatprep.mubr.f32.mxu0 0.0
    %189 = vmatmul.mubr.f32.gmra.mrb[0].mxu0 %v97
    %v190 = vpop.f32.mrb[0].mxu0
    %v191 = vadd.f32 0.0, %v190
    %v192 = vpop.f32.mrb[0].mxu0
    %193 = vmatprep.mubr.f32.mxu0 0.0
    %194 = vmatmul.mubr.f32.gmra.mrb[0].mxu0 %v100
    %v195 = vpop.f32.mrb[0].mxu0
    %v196 = vadd.f32 0.0, %v195
    %v197 = vpop.f32.mrb[0].mxu0
    %198 = vdwg.mxu0
    %v199 = vmul.f32 %v181, 0.5
    %v200 = vmul.f32 %v186, 0.5
    %v201 = vmul.f32 %v191, 0.5
    %v202 = vmul.f32 %v196, 0.5
    %v203 = vmul.f32 %v181, 0.70710677
    %v204 = vmul.f32 %v186, 0.70710677
    %v205 = vmul.f32 %v191, 0.70710677
    %v206 = vmul.f32 %v196, 0.70710677
    %v207 = verf.f32.pop %v203
    %v208 = verf.f32.pop %v204
    %v209 = verf.f32.pop %v205
    %v210 = verf.f32.pop %v206
    %v211 = vadd.f32 %v207, 1.0
    %v212 = vadd.f32 %v208, 1.0
    %v213 = vadd.f32 %v209, 1.0
    %v214 = vadd.f32 %v210, 1.0
    %v215 = vmul.f32 %v199, %v211
    %v216 = vmul.f32 %v200, %v212
    %v217 = vmul.f32 %v201, %v213
    %v218 = vmul.f32 %v202, %v214
    %v220 = vsel %vm89, %v77, 0
    %v223 = vsel %vm89, %v215, 0
    %225 = vmatprep.subr.mxu0 0.0
    %226 = vmatpush1.xpose.msra.mxu0 %v223
    %227 = vmatprep.subr.mxu0 0.0
    %228 = vmatpush1.xpose.msra.mxu0 0.0
    %229 = vmatprep.subr.mxu0 0.0
    %230 = vmatpush1.xpose.msra.mxu0 0.0
    %231 = vmatprep.subr.mxu0 0.0
    %232 = vmatpush1.xpose.msra.mxu0 0.0
    %233 = vmatprep.subr.mxu0 0.0
    %234 = vmatpush1.xpose.msra.mxu0 0.0
    %235 = vmatprep.subr.mxu0 0.0
    %236 = vmatpush1.xpose.msra.mxu0 0.0
    %237 = vmatprep.subr.mxu0 0.0
    %238 = vmatpush1.xpose.msra.mxu0 0.0
    %239 = vmatprep.subr.mxu0 0.0
    %240 = vmatpush1.xpose.msra.mxu0 0.0
    %241 = vmatprep.subr.mxu0 0.0
    %242 = vmatpush1.xpose.msra.mxu0 0.0
    %243 = vmatprep.subr.mxu0 0.0
    %244 = vmatpush1.xpose.msra.mxu0 0.0
    %245 = vmatprep.subr.mxu0 0.0
    %246 = vmatpush1.xpose.msra.mxu0 0.0
    %247 = vmatprep.subr.mxu0 0.0
    %248 = vmatpush1.xpose.msra.mxu0 0.0
    %249 = vmatprep.subr.mxu0 0.0
    %250 = vmatpush1.xpose.msra.mxu0 0.0
    %251 = vmatprep.subr.mxu0 0.0
    %252 = vmatpush1.xpose.msra.mxu0 0.0
    %253 = vmatprep.subr.mxu0 0.0
    %254 = vmatpush1.xpose.msra.mxu0 0.0
    %255 = vmatprep.subr.mxu0 0.0
    %256 = vmatpush1.xpose.msra.mxu0 0.0
    %257 = vmatprep.subr.mxu0 0.0
    %258 = vmatpush1.xpose.msra.mxu0 0.0
    %259 = vmatprep.subr.mxu0 0.0
    %260 = vmatpush1.xpose.msra.mxu0 0.0
    %261 = vmatprep.subr.mxu0 0.0
    %262 = vmatpush1.xpose.msra.mxu0 0.0
    %263 = vmatprep.subr.mxu0 0.0
    %264 = vmatpush1.xpose.msra.mxu0 0.0
    %265 = vmatprep.subr.mxu0 0.0
    %266 = vmatpush1.xpose.msra.mxu0 0.0
    %267 = vmatprep.subr.mxu0 0.0
    %268 = vmatpush1.xpose.msra.mxu0 0.0
    %269 = vmatprep.subr.mxu0 0.0
    %270 = vmatpush1.xpose.msra.mxu0 0.0
    %271 = vmatprep.subr.mxu0 0.0
    %272 = vmatpush1.xpose.msra.mxu0 0.0
    %273 = vmatprep.subr.mxu0 0.0
    %274 = vmatpush1.xpose.msra.mxu0 0.0
    %275 = vmatprep.subr.mxu0 0.0
    %276 = vmatpush1.xpose.msra.mxu0 0.0
    %277 = vmatprep.subr.mxu0 0.0
    %278 = vmatpush1.xpose.msra.mxu0 0.0
    %279 = vmatprep.subr.mxu0 0.0
    %280 = vmatpush1.xpose.msra.mxu0 0.0
    %281 = vmatprep.subr.mxu0 0.0
    %282 = vmatpush1.xpose.msra.mxu0 0.0
    %283 = vmatprep.subr.mxu0 0.0
    %284 = vmatpush1.xpose.msra.mxu0 0.0
    %285 = vmatprep.subr.mxu0 0.0
    %286 = vmatpush1.xpose.msra.mxu0 0.0
    %287 = vmatprep.subr.mxu0 0.0
    %288 = vmatpush1.xpose.msra.mxu0 0.0
    %289 = vmatprep.mubr.f32.mxu0 0.0
    %290 = vmatmul.mubr.f32.gmra.mrb[0].mxu0 %v220
    %v291 = vpop.f32.mrb[0].mxu0
    %v292 = vadd.f32 0.0, %v291
    %v293 = vpop.f32.mrb[0].mxu0
    %294 = vdwg.mxu0
    %v296 = vsel %vm89, %v78, 0
    %v299 = vsel %vm89, %v216, 0
    %301 = vmatprep.subr.mxu0 0.0
    %302 = vmatpush1.xpose.msra.mxu0 %v299
    %303 = vmatprep.subr.mxu0 0.0
    %304 = vmatpush1.xpose.msra.mxu0 0.0
    %305 = vmatprep.subr.mxu0 0.0
    %306 = vmatpush1.xpose.msra.mxu0 0.0
    %307 = vmatprep.subr.mxu0 0.0
    %308 = vmatpush1.xpose.msra.mxu0 0.0
    %309 = vmatprep.subr.mxu0 0.0
    %310 = vmatpush1.xpose.msra.mxu0 0.0
    %311 = vmatprep.subr.mxu0 0.0
    %312 = vmatpush1.xpose.msra.mxu0 0.0
    %313 = vmatprep.subr.mxu0 0.0
    %314 = vmatpush1.xpose.msra.mxu0 0.0
    %315 = vmatprep.subr.mxu0 0.0
    %316 = vmatpush1.xpose.msra.mxu0 0.0
    %317 = vmatprep.subr.mxu0 0.0
    %318 = vmatpush1.xpose.msra.mxu0 0.0
    %319 = vmatprep.subr.mxu0 0.0
    %320 = vmatpush1.xpose.msra.mxu0 0.0
    %321 = vmatprep.subr.mxu0 0.0
    %322 = vmatpush1.xpose.msra.mxu0 0.0
    %323 = vmatprep.subr.mxu0 0.0
    %324 = vmatpush1.xpose.msra.mxu0 0.0
    %325 = vmatprep.subr.mxu0 0.0
    %326 = vmatpush1.xpose.msra.mxu0 0.0
    %327 = vmatprep.subr.mxu0 0.0
    %328 = vmatpush1.xpose.msra.mxu0 0.0
    %329 = vmatprep.subr.mxu0 0.0
    %330 = vmatpush1.xpose.msra.mxu0 0.0
    %331 = vmatprep.subr.mxu0 0.0
    %332 = vmatpush1.xpose.msra.mxu0 0.0
    %333 = vmatprep.subr.mxu0 0.0
    %334 = vmatpush1.xpose.msra.mxu0 0.0
    %335 = vmatprep.subr.mxu0 0.0
    %336 = vmatpush1.xpose.msra.mxu0 0.0
    %337 = vmatprep.subr.mxu0 0.0
    %338 = vmatpush1.xpose.msra.mxu0 0.0
    %339 = vmatprep.subr.mxu0 0.0
    %340 = vmatpush1.xpose.msra.mxu0 0.0
    %341 = vmatprep.subr.mxu0 0.0
    %342 = vmatpush1.xpose.msra.mxu0 0.0
    %343 = vmatprep.subr.mxu0 0.0
    %344 = vmatpush1.xpose.msra.mxu0 0.0
    %345 = vmatprep.subr.mxu0 0.0
    %346 = vmatpush1.xpose.msra.mxu0 0.0
    %347 = vmatprep.subr.mxu0 0.0
    %348 = vmatpush1.xpose.msra.mxu0 0.0
    %349 = vmatprep.subr.mxu0 0.0
    %350 = vmatpush1.xpose.msra.mxu0 0.0
    %351 = vmatprep.subr.mxu0 0.0
    %352 = vmatpush1.xpose.msra.mxu0 0.0
    %353 = vmatprep.subr.mxu0 0.0
    %354 = vmatpush1.xpose.msra.mxu0 0.0
    %355 = vmatprep.subr.mxu0 0.0
    %356 = vmatpush1.xpose.msra.mxu0 0.0
    %357 = vmatprep.subr.mxu0 0.0
    %358 = vmatpush1.xpose.msra.mxu0 0.0
    %359 = vmatprep.subr.mxu0 0.0
    %360 = vmatpush1.xpose.msra.mxu0 0.0
    %361 = vmatprep.subr.mxu0 0.0
    %362 = vmatpush1.xpose.msra.mxu0 0.0
    %363 = vmatprep.subr.mxu0 0.0
    %364 = vmatpush1.xpose.msra.mxu0 0.0
    %365 = vmatprep.mubr.f32.mxu0 0.0
    %366 = vmatmul.mubr.f32.gmra.mrb[0].mxu0 %v296
    %v367 = vpop.f32.mrb[0].mxu0
    %v368 = vadd.f32 0.0, %v367
    %v369 = vpop.f32.mrb[0].mxu0
    %370 = vdwg.mxu0
    %v372 = vsel %vm89, %v79, 0
    %v375 = vsel %vm89, %v217, 0
    %377 = vmatprep.subr.mxu0 0.0
    %378 = vmatpush1.xpose.msra.mxu0 %v375
    %379 = vmatprep.subr.mxu0 0.0
    %380 = vmatpush1.xpose.msra.mxu0 0.0
    %381 = vmatprep.subr.mxu0 0.0
    %382 = vmatpush1.xpose.msra.mxu0 0.0
    %383 = vmatprep.subr.mxu0 0.0
    %384 = vmatpush1.xpose.msra.mxu0 0.0
    %385 = vmatprep.subr.mxu0 0.0
    %386 = vmatpush1.xpose.msra.mxu0 0.0
    %387 = vmatprep.subr.mxu0 0.0
    %388 = vmatpush1.xpose.msra.mxu0 0.0
    %389 = vmatprep.subr.mxu0 0.0
    %390 = vmatpush1.xpose.msra.mxu0 0.0
    %391 = vmatprep.subr.mxu0 0.0
    %392 = vmatpush1.xpose.msra.mxu0 0.0
    %393 = vmatprep.subr.mxu0 0.0
    %394 = vmatpush1.xpose.msra.mxu0 0.0
    %395 = vmatprep.subr.mxu0 0.0
    %396 = vmatpush1.xpose.msra.mxu0 0.0
    %397 = vmatprep.subr.mxu0 0.0
    %398 = vmatpush1.xpose.msra.mxu0 0.0
    %399 = vmatprep.subr.mxu0 0.0
    %400 = vmatpush1.xpose.msra.mxu0 0.0
    %401 = vmatprep.subr.mxu0 0.0
    %402 = vmatpush1.xpose.msra.mxu0 0.0
    %403 = vmatprep.subr.mxu0 0.0
    %404 = vmatpush1.xpose.msra.mxu0 0.0
    %405 = vmatprep.subr.mxu0 0.0
    %406 = vmatpush1.xpose.msra.mxu0 0.0
    %407 = vmatprep.subr.mxu0 0.0
    %408 = vmatpush1.xpose.msra.mxu0 0.0
    %409 = vmatprep.subr.mxu0 0.0
    %410 = vmatpush1.xpose.msra.mxu0 0.0
    %411 = vmatprep.subr.mxu0 0.0
    %412 = vmatpush1.xpose.msra.mxu0 0.0
    %413 = vmatprep.subr.mxu0 0.0
    %414 = vmatpush1.xpose.msra.mxu0 0.0
    %415 = vmatprep.subr.mxu0 0.0
    %416 = vmatpush1.xpose.msra.mxu0 0.0
    %417 = vmatprep.subr.mxu0 0.0
    %418 = vmatpush1.xpose.msra.mxu0 0.0
    %419 = vmatprep.subr.mxu0 0.0
    %420 = vmatpush1.xpose.msra.mxu0 0.0
    %421 = vmatprep.subr.mxu0 0.0
    %422 = vmatpush1.xpose.msra.mxu0 0.0
    %423 = vmatprep.subr.mxu0 0.0
    %424 = vmatpush1.xpose.msra.mxu0 0.0
    %425 = vmatprep.subr.mxu0 0.0
    %426 = vmatpush1.xpose.msra.mxu0 0.0
    %427 = vmatprep.subr.mxu0 0.0
    %428 = vmatpush1.xpose.msra.mxu0 0.0
    %429 = vmatprep.subr.mxu0 0.0
    %430 = vmatpush1.xpose.msra.mxu0 0.0
    %431 = vmatprep.subr.mxu0 0.0
    %432 = vmatpush1.xpose.msra.mxu0 0.0
    %433 = vmatprep.subr.mxu0 0.0
    %434 = vmatpush1.xpose.msra.mxu0 0.0
    %435 = vmatprep.subr.mxu0 0.0
    %436 = vmatpush1.xpose.msra.mxu0 0.0
    %437 = vmatprep.subr.mxu0 0.0
    %438 = vmatpush1.xpose.msra.mxu0 0.0
    %439 = vmatprep.subr.mxu0 0.0
    %440 = vmatpush1.xpose.msra.mxu0 0.0
    %441 = vmatprep.mubr.f32.mxu0 0.0
    %442 = vmatmul.mubr.f32.gmra.mrb[0].mxu0 %v372
    %v443 = vpop.f32.mrb[0].mxu0
    %v444 = vadd.f32 0.0, %v443
    %v445 = vpop.f32.mrb[0].mxu0
    %446 = vdwg.mxu0
    %v448 = vsel %vm89, %v80, 0
    %v451 = vsel %vm89, %v218, 0
    %453 = vmatprep.subr.mxu0 0.0
    %454 = vmatpush1.xpose.msra.mxu0 %v451
    %455 = vmatprep.subr.mxu0 0.0
    %456 = vmatpush1.xpose.msra.mxu0 0.0
    %457 = vmatprep.subr.mxu0 0.0
    %458 = vmatpush1.xpose.msra.mxu0 0.0
    %459 = vmatprep.subr.mxu0 0.0
    %460 = vmatpush1.xpose.msra.mxu0 0.0
    %461 = vmatprep.subr.mxu0 0.0
    %462 = vmatpush1.xpose.msra.mxu0 0.0
    %463 = vmatprep.subr.mxu0 0.0
    %464 = vmatpush1.xpose.msra.mxu0 0.0
    %465 = vmatprep.subr.mxu0 0.0
    %466 = vmatpush1.xpose.msra.mxu0 0.0
    %467 = vmatprep.subr.mxu0 0.0
    %468 = vmatpush1.xpose.msra.mxu0 0.0
    %469 = vmatprep.subr.mxu0 0.0
    %470 = vmatpush1.xpose.msra.mxu0 0.0
    %471 = vmatprep.subr.mxu0 0.0
    %472 = vmatpush1.xpose.msra.mxu0 0.0
    %473 = vmatprep.subr.mxu0 0.0
    %474 = vmatpush1.xpose.msra.mxu0 0.0
    %475 = vmatprep.subr.mxu0 0.0
    %476 = vmatpush1.xpose.msra.mxu0 0.0
    %477 = vmatprep.subr.mxu0 0.0
    %478 = vmatpush1.xpose.msra.mxu0 0.0
    %479 = vmatprep.subr.mxu0 0.0
    %480 = vmatpush1.xpose.msra.mxu0 0.0
    %481 = vmatprep.subr.mxu0 0.0
    %482 = vmatpush1.xpose.msra.mxu0 0.0
    %483 = vmatprep.subr.mxu0 0.0
    %484 = vmatpush1.xpose.msra.mxu0 0.0
    %485 = vmatprep.subr.mxu0 0.0
    %486 = vmatpush1.xpose.msra.mxu0 0.0
    %487 = vmatprep.subr.mxu0 0.0
    %488 = vmatpush1.xpose.msra.mxu0 0.0
    %489 = vmatprep.subr.mxu0 0.0
    %490 = vmatpush1.xpose.msra.mxu0 0.0
    %491 = vmatprep.subr.mxu0 0.0
    %492 = vmatpush1.xpose.msra.mxu0 0.0
    %493 = vmatprep.subr.mxu0 0.0
    %494 = vmatpush1.xpose.msra.mxu0 0.0
    %495 = vmatprep.subr.mxu0 0.0
    %496 = vmatpush1.xpose.msra.mxu0 0.0
    %497 = vmatprep.subr.mxu0 0.0
    %498 = vmatpush1.xpose.msra.mxu0 0.0
    %499 = vmatprep.subr.mxu0 0.0
    %500 = vmatpush1.xpose.msra.mxu0 0.0
    %501 = vmatprep.subr.mxu0 0.0
    %502 = vmatpush1.xpose.msra.mxu0 0.0
    %503 = vmatprep.subr.mxu0 0.0
    %504 = vmatpush1.xpose.msra.mxu0 0.0
    %505 = vmatprep.subr.mxu0 0.0
    %506 = vmatpush1.xpose.msra.mxu0 0.0
    %507 = vmatprep.subr.mxu0 0.0
    %508 = vmatpush1.xpose.msra.mxu0 0.0
    %509 = vmatprep.subr.mxu0 0.0
    %510 = vmatpush1.xpose.msra.mxu0 0.0
    %511 = vmatprep.subr.mxu0 0.0
    %512 = vmatpush1.xpose.msra.mxu0 0.0
    %513 = vmatprep.subr.mxu0 0.0
    %514 = vmatpush1.xpose.msra.mxu0 0.0
    %515 = vmatprep.subr.mxu0 0.0
    %516 = vmatpush1.xpose.msra.mxu0 0.0
    %517 = vmatprep.mubr.f32.mxu0 0.0
    %518 = vmatmul.mubr.f32.gmra.mrb[0].mxu0 %v448
    %v519 = vpop.f32.mrb[0].mxu0
    %v520 = vadd.f32 0.0, %v519
    %v521 = vpop.f32.mrb[0].mxu0
    %522 = vdwg.mxu0
    %vm523 = vcmask 64512
    %v524 = vsel %vm523, %v292, -inf
    %525 = vmax.xlane.f32.xlu0 %v524
    %v526 = vpop.xlane.xlu0 %525
    %v527 = vsel %vm523, %v368, -inf
    %528 = vmax.xlane.f32.xlu0 %v527
    %v529 = vpop.xlane.xlu0 %528
    %v530 = vsel %vm523, %v444, -inf
    %531 = vmax.xlane.f32.xlu0 %v530
    %v532 = vpop.xlane.xlu0 %531
    %v533 = vsel %vm523, %v520, -inf
    %534 = vmax.xlane.f32.xlu0 %v533
    %v535 = vpop.xlane.xlu0 %534
    %v536 = vsub.f32 %v292, %v526
    %v537 = vsub.f32 %v368, %v529
    %v538 = vsub.f32 %v444, %v532
    %v539 = vsub.f32 %v520, %v535
    %v540 = vmul.f32 %v536, 1.442695
    %v541 = vpow.pop %v540
    %v542 = vmul.f32 %v537, 1.442695
    %v543 = vpow.pop %v542
    %v544 = vmul.f32 %v538, 1.442695
    %v545 = vpow.pop %v544
    %v546 = vmul.f32 %v539, 1.442695
    %v547 = vpow.pop %v546
    %v548 = vsel %vm523, %v541, 0.0
    %549 = vadd.xlane.f32.xlu0 %v548
    %v550 = vpop.xlane.xlu0 %549
    %v551 = vsel %vm523, %v543, 0.0
    %552 = vadd.xlane.f32.xlu0 %v551
    %v553 = vpop.xlane.xlu0 %552
    %v554 = vsel %vm523, %v545, 0.0
    %555 = vadd.xlane.f32.xlu0 %v554
    %v556 = vpop.xlane.xlu0 %555
    %v557 = vsel %vm523, %v547, 0.0
    %558 = vadd.xlane.f32.xlu0 %v557
    %v559 = vpop.xlane.xlu0 %558
    %v560 = vmul.f32 %v541, %v81
    %v561 = vmul.f32 %v543, %v82
    %v562 = vmul.f32 %v545, %v83
    %v563 = vmul.f32 %v547, %v84
    %v564 = vsel %vm523, %v560, 0.0
    %565 = vadd.xlane.f32.xlu0 %v564
    %v566 = vpop.xlane.xlu0 %565
    %v567 = vsel %vm523, %v561, 0.0
    %568 = vadd.xlane.f32.xlu0 %v567
    %v569 = vpop.xlane.xlu0 %568
    %v570 = vsel %vm523, %v562, 0.0
    %571 = vadd.xlane.f32.xlu0 %v570
    %v572 = vpop.xlane.xlu0 %571
    %v573 = vsel %vm523, %v563, 0.0
    %574 = vadd.xlane.f32.xlu0 %v573
    %v575 = vpop.xlane.xlu0 %574
    %v576 = vrcp.pop %v550
    %v577 = vmul.f32 %v566, %v576
    %v578 = vrcp.pop %v553
    %v579 = vmul.f32 %v569, %v578
    %v580 = vrcp.pop %v556
    %v581 = vmul.f32 %v572, %v580
    %v582 = vrcp.pop %v559
    %v583 = vmul.f32 %v575, %v582
    %v588 = vlaneseq
    %v589 = vand.u32 %v588, 127
    %v590 = vlaneseq
    %v591 = vshrl.u32 %v590, 7
    %v592 = vsub.s32 %v589, %v591
    %v593 = vrot.slane %v577, %v592
    %v594 = vlaneseq
    %v595 = vshrl.u32 %v594, 7
    %v596 = vsub.s32 %v589, %v595
    %v597 = vrot.slane %v579, %v596
    %v598 = vlaneseq
    %v599 = vshrl.u32 %v598, 7
    %v600 = vsub.s32 %v589, %v599
    %v601 = vrot.slane %v581, %v600
    %v602 = vlaneseq
    %v603 = vshrl.u32 %v602, 7
    %v604 = vsub.s32 %v589, %v603
    %v605 = vrot.slane %v583, %v604
    %vm606 = vcmask 1041409
    %v607 = vsel %vm606, %v597, %v593
    %vm608 = vcmask 1042434
    %v609 = vsel %vm608, %v601, %v607
    %vm610 = vcmask 1043459
    %v611 = vsel %vm610, %v605, %v609
    %vm613 = vcmask 60416
    %614 = vst.msk [vmem:[#allocation10] sm:$0xf] %vm613, %v611
    // Predicated region
    $region34: #{tpu_custom_call.1} parent=1 // pred_check
      _
    $region35: #{tpu_custom_call.1} parent=1 // pred_check_branch
      %616 = sbr.rel (0) target = $region37
    $region36: #{tpu_custom_call.1} parent=1 // pred_region
      %s618 = ssub.s32 64, 64
      %619 = vsyncadd [#allocation4], %s618
      %s621 = sshll.u32 [#allocation10], 4
      %s622 = int_to_ptr.vmem [resolvable:$true] %s621
      %624 = dma.vmem_to_hbm [thread:$0]  %s622, 64, %s4, [#allocation4]
    $region37: #{tpu_custom_call.1} parent=1 // pred_fallthru
      _
    // Predicated region
    $region38: #{tpu_custom_call.1} parent=1 // pred_check
      _
    $region39: #{tpu_custom_call.1} parent=1 // pred_check_branch
      %626 = sbr.rel (0) target = $region41
    $region40: #{tpu_custom_call.1} parent=1 // pred_region
      %627 = dma.done [#allocation4], 64
    $region41: #{tpu_custom_call.1} parent=1 // pred_fallthru
      _
    %628 = vsyncpa [#allocation3], 1
    %629 = vsyncpa [#allocation6], 1
    %630 = vsyncpa [#allocation9], 1
    %631 = vsyncpa [#allocation4], 1

</llo_original>
